<compile_context>
chip_gen: v7x
topology: tpu7x:2x2x1
jax: 0.10.0
libtpu: 0.0.40
codegen_flags: <defaults>
</compile_context>

<pallas_src>
import jax
import jax.numpy as jnp
from jax import lax
from jax.experimental import pallas as pl
from jax.experimental.pallas import tpu as pltpu

H = W = 64            # module hard-codes 64x64 spatial dims
PACK_ROWS = 32        # (64, 64) repacked as (32, 128): two spatial rows per vreg row
PACK_LANES = 128
CBLK_CAP = 128        # 128 ch * 16 KiB = 2 MiB input block; ~8 MiB dbl-buffered in+out


def _patch_mask_kernel(s_ref, x_ref, o_ref):
    # s_ref: SMEM int32 (3,) = [w, h, taille]   (scalar prefetch)
    # x_ref: VMEM (cblk, 32, 128)   -- (C, 64, 64) packed lane-dense
    # o_ref: VMEM (cblk, 32, 128)
    w = s_ref[0]
    h = s_ref[1]
    t = s_ref[2]

    # Rebuild spatial (i, j) from the packed (row, lane) layout:
    #   packed element (r, c) holds spatial (i, j) with i = 2*r + (c // 64), j = c % 64
    r_idx = lax.broadcasted_iota(jnp.int32, (PACK_ROWS, PACK_LANES), 0)
    c_idx = lax.broadcasted_iota(jnp.int32, (PACK_ROWS, PACK_LANES), 1)
    i = 2 * r_idx + (c_idx >> 6)          # spatial row in [0, 64)
    j = c_idx & 63                        # spatial col in [0, 64)

    inside = (i >= w) & (i < w + t) & (j >= h) & (j < h + t)
    # Match PyTorch exactly: multiply by a 0/1 mask of the input dtype
    # (keeps 0*NaN = NaN outside the patch, unlike jnp.where(inside, x, 0)).
    mask = inside.astype(x_ref.dtype)

    o_ref[...] = x_ref[...] * mask[None, :, :]


def patch_block_pallas(x, w, h, taille):
    """x: [C, 64, 64]; w, h: patch offsets (runtime ints); taille: patch size."""
    C, Hx, Wx = x.shape
    assert Hx == H and Wx == W, "Patch_block expects 64x64 trailing dims"

    # Contiguous (free) reshape to a lane-dense layout: full 128-lane vregs
    # for both loads and stores.
    x_packed = x.reshape(C, PACK_ROWS, PACK_LANES)
    scalars = jnp.array([w, h, taille], dtype=jnp.int32)

    # Fixed cap, cdiv grid: no divisor games, no artificial splitting for
    # single-TC chips, robust to awkward / prime C.
    cblk = min(C, CBLK_CAP)
    grid = (pl.cdiv(C, cblk),)

    itemsize = jnp.dtype(x.dtype).itemsize
    cost = pl.CostEstimate(
        flops=C * H * W,                       # one multiply per element
        transcendentals=0,
        bytes_accessed=2 * C * H * W * itemsize,
    )

    out_packed = pl.pallas_call(
        _patch_mask_kernel,
        out_shape=jax.ShapeDtypeStruct((C, PACK_ROWS, PACK_LANES), x.dtype),
        grid_spec=pltpu.PrefetchScalarGridSpec(
            num_scalar_prefetch=1,
            grid=grid,
            in_specs=[
                pl.BlockSpec((cblk, PACK_ROWS, PACK_LANES),
                             lambda i, s: (i, 0, 0)),
            ],
            out_specs=pl.BlockSpec((cblk, PACK_ROWS, PACK_LANES),
                                   lambda i, s: (i, 0, 0)),
        ),
        compiler_params=pltpu.CompilerParams(
            dimension_semantics=("parallel",)),
        cost_estimate=cost,
    )(scalars, x_packed)

    return out_packed.reshape(C, H, W)


if __name__ == "__main__":
    key = jax.random.PRNGKey(0)
    kx, kw, kh = jax.random.split(key, 3)

    taille = 16
    C = 8
    x = jax.random.normal(kx, (C, H, W), dtype=jnp.float32)

    # Deterministic stand-in for np.random.randint(0, 64 - taille)
    w = int(jax.random.randint(kw, (), 0, H - taille))
    h = int(jax.random.randint(kh, (), 0, W - taille))

    out = patch_block_pallas(x, w, h, taille)
    out = jax.block_until_ready(out)

    # Pure-JAX reference: r * x with r = 1 inside the patch, 0 elsewhere.
    ii = jnp.arange(H)
    mask2d = ((ii[:, None] >= w) & (ii[:, None] < w + taille) &
              (ii[None, :] >= h) & (ii[None, :] < h + taille)).astype(x.dtype)
    ref = x * mask2d[None, :, :]

    assert out.shape == (C, H, W), out.shape
    assert jnp.array_equal(out, ref), "mismatch vs reference patch mask"

    print("KERNEL_OK")
</pallas_src>

<mosaic_0001>
module attributes {stable_mosaic.version = 11 : i64} {
  func.func @_patch_mask_kernel(%arg0: i32, %arg1: memref<3xi32, #tpu.memory_space<smem>>, %arg2: memref<8x32x128xf32, #tpu.memory_space<vmem>>, %arg3: memref<8x32x128xf32, #tpu.memory_space<vmem>>) attributes {dimension_semantics = [#tpu.dimension_semantics<parallel>], iteration_bounds = array<i64: 1>, scalar_prefetch = 1 : i64, scratch_operands = 0 : i64, tpu.core_type = #tpu.core_type<tc>, window_params = [{transform_indices = @transform_0, window_bounds = array<i64: 8, 32, 128>}, {transform_indices = @transform_1, window_bounds = array<i64: 8, 32, 128>}]} {
    %c0 = arith.constant 0 : index
    %0 = memref.load %arg1[%c0] : memref<3xi32, #tpu.memory_space<smem>>
    %c1 = arith.constant 1 : index
    %1 = memref.load %arg1[%c1] : memref<3xi32, #tpu.memory_space<smem>>
    %c2 = arith.constant 2 : index
    %2 = memref.load %arg1[%c2] : memref<3xi32, #tpu.memory_space<smem>>
    %3 = tpu.iota {dimensions = array<i32: 0>} : vector<32x128xi32>
    %4 = tpu.iota {dimensions = array<i32: 1>} : vector<32x128xi32>
    %c2_i32 = arith.constant 2 : i32
    %5 = vector.broadcast %c2_i32 : i32 to vector<32x128xi32>
    %6 = arith.muli %5, %3 : vector<32x128xi32>
    %c6_i32 = arith.constant 6 : i32
    %7 = vector.broadcast %c6_i32 : i32 to vector<32x128xi32>
    %8 = arith.shrsi %4, %7 : vector<32x128xi32>
    %9 = arith.addi %6, %8 : vector<32x128xi32>
    %c63_i32 = arith.constant 63 : i32
    %10 = vector.broadcast %c63_i32 : i32 to vector<32x128xi32>
    %11 = arith.andi %4, %10 : vector<32x128xi32>
    %12 = vector.broadcast %0 : i32 to vector<32x128xi32>
    %13 = arith.cmpi sge, %9, %12 : vector<32x128xi32>
    %14 = arith.addi %0, %2 : i32
    %15 = vector.broadcast %14 : i32 to vector<32x128xi32>
    %16 = arith.cmpi slt, %9, %15 : vector<32x128xi32>
    %17 = arith.andi %13, %16 : vector<32x128xi1>
    %18 = vector.broadcast %1 : i32 to vector<32x128xi32>
    %19 = arith.cmpi sge, %11, %18 : vector<32x128xi32>
    %20 = arith.andi %17, %19 : vector<32x128xi1>
    %21 = arith.addi %1, %2 : i32
    %22 = vector.broadcast %21 : i32 to vector<32x128xi32>
    %23 = arith.cmpi slt, %11, %22 : vector<32x128xi32>
    %24 = arith.andi %20, %23 : vector<32x128xi1>
    %25 = arith.extui %24 : vector<32x128xi1> to vector<32x128xi32>
    %26 = arith.sitofp %25 : vector<32x128xi32> to vector<32x128xf32>
    %c0_0 = arith.constant 0 : index
    %c0_1 = arith.constant 0 : index
    %c0_2 = arith.constant 0 : index
    %27 = vector.load %arg2[%c0_0, %c0_1, %c0_2] : memref<8x32x128xf32, #tpu.memory_space<vmem>>, vector<8x32x128xf32>
    %28 = vector.shape_cast %26 : vector<32x128xf32> to vector<1x32x128xf32>
    %29 = vector.broadcast %28 : vector<1x32x128xf32> to vector<8x32x128xf32>
    %30 = arith.mulf %27, %29 : vector<8x32x128xf32>
    %c0_3 = arith.constant 0 : index
    %c0_4 = arith.constant 0 : index
    %c0_5 = arith.constant 0 : index
    %31 = vector.load %arg3[%c0_3, %c0_4, %c0_5] : memref<8x32x128xf32, #tpu.memory_space<vmem>>, vector<8x32x128xf32>
    tpu.vector_store %arg3[%c0_3, %c0_4, %c0_5], %30 {strides = array<i32>} : memref<8x32x128xf32, #tpu.memory_space<vmem>>, vector<8x32x128xf32>,
    return
  }
  func.func @transform_0(%arg0: i32, %arg1: memref<3xi32, #tpu.memory_space<smem>>) -> (i32, i32, i32) {
    %c0_i32 = arith.constant 0 : i32
    %c0_i32_0 = arith.constant 0 : i32
    %c0_i32_1 = arith.constant 0 : i32
    return %arg0, %c0_i32, %c0_i32_0 : i32, i32, i32
  }
  func.func @transform_1(%arg0: i32, %arg1: memref<3xi32, #tpu.memory_space<smem>>) -> (i32, i32, i32) {
    %c0_i32 = arith.constant 0 : i32
    %c0_i32_0 = arith.constant 0 : i32
    %c0_i32_1 = arith.constant 0 : i32
    return %arg0, %c0_i32, %c0_i32_0 : i32, i32, i32
  }
}

</mosaic_0001>

<llo_original>
// kernel: tpu_custom_call.1
$region0: #{tpu_custom_call.1}
  #allocation0 [shape = 'u32[]', space=smem, size = 0x4, offset = 0x4, fixed_abs, tag = 'smem constant byte address 0x4 - core index']
  #allocation1 [shape = 'u32[144,128]{1,0:T(1,128)}', space=vmem, size = 0x12000, scoped, tag = 'internal scratch']
  #allocation2 [shape = 's32[1]{0}', space=sflag, size = 0x4, scoped, tag = 'scoped memory for tpu_custom_call.1']
  #allocation3 [shape = 'u8[512]{0}', space=smem, size = 0x200, scoped, tag = 'prefetched SMEM operand 0']
  %s0 = inlined_call_operand.hbm [shape: s32[3], index: 0, kind: input, shape index: {}]
  %s1 = inlined_call_operand.hbm [shape: f32[8,32,128], index: 1, kind: input, shape index: {}]
  %s2 = inlined_call_operand.hbm [shape: f32[8,32,128], index: 2, kind: output, shape index: {}]
  %s3 = sld [smem:[#allocation0]]
  $region18: #{tpu_custom_call.1} parent=0
    _
  %s5 = ssub.s32 1, %s3
  %s6 = scalar_select 0, %s5, %s3
  %8 = dma.hbm_to_smem %s0, 16, [#allocation3], [#allocation2]
  %9 = dma.done [#allocation2], 16
  %10 = sfence
  $region1: #{tpu_custom_call.1} parent=0
    #allocation4 [shape = 'u8[131072]{0}', space=vmem, size = 0x20000, scoped, tag = 'input window, operand 1, single buffered']
    #allocation5 [shape = 's32[1]{0}', space=sflag, size = 0x4, scoped, tag = 'scoped memory for tpu_custom_call.1']
    #allocation6 [shape = 's32[1]{0}', space=sflag, size = 0x4, scoped, tag = 'scoped memory for tpu_custom_call.1']
    #allocation7 [shape = 'u8[131072]{0}', space=vmem, size = 0x20000, scoped, tag = 'output window, operand 0, single buffered']
    %11 = vsyncpa [#allocation5], 0
    %12 = vsyncpa [#allocation6], 0
    // Predicated region
    $region2: #{tpu_custom_call.1} parent=1 // pred_check
      _
    $region3: #{tpu_custom_call.1} parent=1 // pred_check_branch
      %14 = sbr.rel (0) target = $region5
    $region4: #{tpu_custom_call.1} parent=1 // pred_region
      %s16 = ssub.s32 4096, 4096
      %17 = vsyncadd [#allocation5], %s16
      %s18 = sshll.u32 [#allocation4], 4
      %s19 = int_to_ptr.vmem [resolvable:$true] %s18
      %24 = dma.hbm_to_vmem [thread:$0]  %s1, 4096, %s19, [#allocation5], 128, 128, 8
    $region5: #{tpu_custom_call.1} parent=1 // pred_fallthru
      _
    // Predicated region
    $region6: #{tpu_custom_call.1} parent=1 // pred_check
      _
    $region7: #{tpu_custom_call.1} parent=1 // pred_check_branch
      %26 = sbr.rel (0) target = $region9
    $region8: #{tpu_custom_call.1} parent=1 // pred_region
      %27 = dma.done [#allocation5], 4096
    $region9: #{tpu_custom_call.1} parent=1 // pred_fallthru
      _
    %s28 = sld [smem:[#allocation3]]
    %s29 = sld [smem:[#allocation3 + $0x1]]
    %s30 = sld [smem:[#allocation3 + $0x2]]
    %v31 = vlaneseq
    %v32 = vshrl.u32 %v31, 7
    %v33 = vadd.s32 %v32, 8
    %v34 = vadd.s32 %v32, 16
    %v35 = vadd.s32 %v32, 24
    %v36 = vlaneseq
    %v37 = vand.u32 %v36, 127
    %v38 = vmul.u32 %v32, 2
    %v39 = vmul.u32 %v33, 2
    %v40 = vmul.u32 %v34, 2
    %v41 = vmul.u32 %v35, 2
    %v42 = vshra.s32 %v37, 6
    %v43 = vadd.s32 %v38, %v42
    %v44 = vadd.s32 %v39, %v42
    %v45 = vadd.s32 %v40, %v42
    %v46 = vadd.s32 %v41, %v42
    %v47 = vand.u32 %v37, 63
    %v48 = vstv %s28
    %vm49 = vcmp.ge.s32.totalorder %v43, %v48
    %vm50 = vcmp.ge.s32.totalorder %v44, %v48
    %vm51 = vcmp.ge.s32.totalorder %v45, %v48
    %vm52 = vcmp.ge.s32.totalorder %v46, %v48
    %s53 = sadd.s32 %s28, %s30
    %v54 = vstv %s53
    %vm55 = vcmp.lt.s32.totalorder %v43, %v54
    %vm56 = vcmp.lt.s32.totalorder %v44, %v54
    %vm57 = vcmp.lt.s32.totalorder %v45, %v54
    %vm58 = vcmp.lt.s32.totalorder %v46, %v54
    %vm59 = vmand %vm49, %vm55
    %vm60 = vmand %vm50, %vm56
    %vm61 = vmand %vm51, %vm57
    %vm62 = vmand %vm52, %vm58
    %v63 = vstv %s29
    %vm64 = vcmp.ge.s32.totalorder %v47, %v63
    %vm65 = vmand %vm59, %vm64
    %vm66 = vmand %vm60, %vm64
    %vm67 = vmand %vm61, %vm64
    %vm68 = vmand %vm62, %vm64
    %s69 = sadd.s32 %s29, %s30
    %v70 = vstv %s69
    %vm71 = vcmp.lt.s32.totalorder %v47, %v70
    %vm72 = vmand %vm65, %vm71
    %vm73 = vmand %vm66, %vm71
    %vm74 = vmand %vm67, %vm71
    %vm75 = vmand %vm68, %vm71
    %v76 = vsel %vm72, 1, 0
    %v77 = vsel %vm73, 1, 0
    %v78 = vsel %vm74, 1, 0
    %v79 = vsel %vm75, 1, 0
    %v80 = vcvt.s32.f32 %v76
    %v81 = vcvt.s32.f32 %v77
    %v82 = vcvt.s32.f32 %v78
    %v83 = vcvt.s32.f32 %v79
    %v84 = vld [vmem:[#allocation4] sm:$0xff]
    %v85 = vld [vmem:[#allocation4 + $0x8] sm:$0xff]
    %v86 = vld [vmem:[#allocation4 + $0x10] sm:$0xff]
    %v87 = vld [vmem:[#allocation4 + $0x18] sm:$0xff]
    %v88 = vld [vmem:[#allocation4 + $0x20] sm:$0xff]
    %v89 = vld [vmem:[#allocation4 + $0x28] sm:$0xff]
    %v90 = vld [vmem:[#allocation4 + $0x30] sm:$0xff]
    %v91 = vld [vmem:[#allocation4 + $0x38] sm:$0xff]
    %v92 = vld [vmem:[#allocation4 + $0x40] sm:$0xff]
    %v93 = vld [vmem:[#allocation4 + $0x48] sm:$0xff]
    %v94 = vld [vmem:[#allocation4 + $0x50] sm:$0xff]
    %v95 = vld [vmem:[#allocation4 + $0x58] sm:$0xff]
    %v96 = vld [vmem:[#allocation4 + $0x60] sm:$0xff]
    %v97 = vld [vmem:[#allocation4 + $0x68] sm:$0xff]
    %v98 = vld [vmem:[#allocation4 + $0x70] sm:$0xff]
    %v99 = vld [vmem:[#allocation4 + $0x78] sm:$0xff]
    %v100 = vld [vmem:[#allocation4 + $0x80] sm:$0xff]
    %v101 = vld [vmem:[#allocation4 + $0x88] sm:$0xff]
    %v102 = vld [vmem:[#allocation4 + $0x90] sm:$0xff]
    %v103 = vld [vmem:[#allocation4 + $0x98] sm:$0xff]
    %v104 = vld [vmem:[#allocation4 + $0xa0] sm:$0xff]
    %v105 = vld [vmem:[#allocation4 + $0xa8] sm:$0xff]
    %v106 = vld [vmem:[#allocation4 + $0xb0] sm:$0xff]
    %v107 = vld [vmem:[#allocation4 + $0xb8] sm:$0xff]
    %v108 = vld [vmem:[#allocation4 + $0xc0] sm:$0xff]
    %v109 = vld [vmem:[#allocation4 + $0xc8] sm:$0xff]
    %v110 = vld [vmem:[#allocation4 + $0xd0] sm:$0xff]
    %v111 = vld [vmem:[#allocation4 + $0xd8] sm:$0xff]
    %v112 = vld [vmem:[#allocation4 + $0xe0] sm:$0xff]
    %v113 = vld [vmem:[#allocation4 + $0xe8] sm:$0xff]
    %v114 = vld [vmem:[#allocation4 + $0xf0] sm:$0xff]
    %v115 = vld [vmem:[#allocation4 + $0xf8] sm:$0xff]
    %v116 = vmul.f32 %v84, %v80
    %v117 = vmul.f32 %v85, %v81
    %v118 = vmul.f32 %v86, %v82
    %v119 = vmul.f32 %v87, %v83
    %v120 = vmul.f32 %v88, %v80
    %v121 = vmul.f32 %v89, %v81
    %v122 = vmul.f32 %v90, %v82
    %v123 = vmul.f32 %v91, %v83
    %v124 = vmul.f32 %v92, %v80
    %v125 = vmul.f32 %v93, %v81
    %v126 = vmul.f32 %v94, %v82
    %v127 = vmul.f32 %v95, %v83
    %v128 = vmul.f32 %v96, %v80
    %v129 = vmul.f32 %v97, %v81
    %v130 = vmul.f32 %v98, %v82
    %v131 = vmul.f32 %v99, %v83
    %v132 = vmul.f32 %v100, %v80
    %v133 = vmul.f32 %v101, %v81
    %v134 = vmul.f32 %v102, %v82
    %v135 = vmul.f32 %v103, %v83
    %v136 = vmul.f32 %v104, %v80
    %v137 = vmul.f32 %v105, %v81
    %v138 = vmul.f32 %v106, %v82
    %v139 = vmul.f32 %v107, %v83
    %v140 = vmul.f32 %v108, %v80
    %v141 = vmul.f32 %v109, %v81
    %v142 = vmul.f32 %v110, %v82
    %v143 = vmul.f32 %v111, %v83
    %v144 = vmul.f32 %v112, %v80
    %v145 = vmul.f32 %v113, %v81
    %v146 = vmul.f32 %v114, %v82
    %v147 = vmul.f32 %v115, %v83
    %148 = vst [vmem:[#allocation7] sm:$0xff] %v116
    %149 = vst [vmem:[#allocation7 + $0x8] sm:$0xff] %v117
    %150 = vst [vmem:[#allocation7 + $0x10] sm:$0xff] %v118
    %151 = vst [vmem:[#allocation7 + $0x18] sm:$0xff] %v119
    %152 = vst [vmem:[#allocation7 + $0x20] sm:$0xff] %v120
    %153 = vst [vmem:[#allocation7 + $0x28] sm:$0xff] %v121
    %154 = vst [vmem:[#allocation7 + $0x30] sm:$0xff] %v122
    %155 = vst [vmem:[#allocation7 + $0x38] sm:$0xff] %v123
    %156 = vst [vmem:[#allocation7 + $0x40] sm:$0xff] %v124
    %157 = vst [vmem:[#allocation7 + $0x48] sm:$0xff] %v125
    %158 = vst [vmem:[#allocation7 + $0x50] sm:$0xff] %v126
    %159 = vst [vmem:[#allocation7 + $0x58] sm:$0xff] %v127
    %160 = vst [vmem:[#allocation7 + $0x60] sm:$0xff] %v128
    %161 = vst [vmem:[#allocation7 + $0x68] sm:$0xff] %v129
    %162 = vst [vmem:[#allocation7 + $0x70] sm:$0xff] %v130
    %163 = vst [vmem:[#allocation7 + $0x78] sm:$0xff] %v131
    %164 = vst [vmem:[#allocation7 + $0x80] sm:$0xff] %v132
    %165 = vst [vmem:[#allocation7 + $0x88] sm:$0xff] %v133
    %166 = vst [vmem:[#allocation7 + $0x90] sm:$0xff] %v134
    %167 = vst [vmem:[#allocation7 + $0x98] sm:$0xff] %v135
    %168 = vst [vmem:[#allocation7 + $0xa0] sm:$0xff] %v136
    %169 = vst [vmem:[#allocation7 + $0xa8] sm:$0xff] %v137
    %170 = vst [vmem:[#allocation7 + $0xb0] sm:$0xff] %v138
    %171 = vst [vmem:[#allocation7 + $0xb8] sm:$0xff] %v139
    %172 = vst [vmem:[#allocation7 + $0xc0] sm:$0xff] %v140
    %173 = vst [vmem:[#allocation7 + $0xc8] sm:$0xff] %v141
    %174 = vst [vmem:[#allocation7 + $0xd0] sm:$0xff] %v142
    %175 = vst [vmem:[#allocation7 + $0xd8] sm:$0xff] %v143
    %176 = vst [vmem:[#allocation7 + $0xe0] sm:$0xff] %v144
    %177 = vst [vmem:[#allocation7 + $0xe8] sm:$0xff] %v145
    %178 = vst [vmem:[#allocation7 + $0xf0] sm:$0xff] %v146
    %179 = vst [vmem:[#allocation7 + $0xf8] sm:$0xff] %v147
    // Predicated region
    $region10: #{tpu_custom_call.1} parent=1 // pred_check
      _
    $region11: #{tpu_custom_call.1} parent=1 // pred_check_branch
      %181 = sbr.rel (0) target = $region13
    $region12: #{tpu_custom_call.1} parent=1 // pred_region
      %s183 = ssub.s32 4096, 4096
      %184 = vsyncadd [#allocation6], %s183
      %s185 = sshll.u32 [#allocation7], 4
      %s186 = int_to_ptr.vmem [resolvable:$true] %s185
      %191 = dma.vmem_to_hbm [thread:$0]  %s186, 4096, %s2, [#allocation6], 128, 128, 8
    $region13: #{tpu_custom_call.1} parent=1 // pred_fallthru
      _
    // Predicated region
    $region14: #{tpu_custom_call.1} parent=1 // pred_check
      _
    $region15: #{tpu_custom_call.1} parent=1 // pred_check_branch
      %193 = sbr.rel (0) target = $region17
    $region16: #{tpu_custom_call.1} parent=1 // pred_region
      %194 = dma.done [#allocation6], 4096
    $region17: #{tpu_custom_call.1} parent=1 // pred_fallthru
      _
    %195 = vsyncpa [#allocation5], 1
    %196 = vsyncpa [#allocation6], 1

</llo_original>
